<compile_context>
chip_gen: v7x
topology: tpu7x:2x2x1
jax: 0.10.0
libtpu: 0.0.40
codegen_flags: <defaults>
</compile_context>

<pallas_src>
import jax
import jax.numpy as jnp
from jax.experimental import pallas as pl
from jax.experimental.pallas import tpu as pltpu

# PDE coefficients (defaults of Model_PDE.__init__); gamma is unused by forward().
B, C, SIGMA, B_F, C_F, GAMMA = 0.5, 0.5, 1.0, 0.5, 0.9, 0.1

HIDDEN = 100
IN_DIM = 2
LANES = 128
SUBLANES = 8


def _pick_config(tile_n=None):
    """Generation-aware (tile, vmem_limit) choice; safe fallback if query fails."""
    try:
        info = pltpu.get_tpu_info()
        vmem_bytes = getattr(info, "vmem_capacity_bytes", None) or 64 * 1024 * 1024
    except Exception:  # pragma: no cover - conservative fallback
        vmem_bytes = 64 * 1024 * 1024
    if vmem_bytes >= 100 * 1024 * 1024:          # v5e / v6e: 128 MiB VMEM
        tile, vlim = 4096, 64 * 1024 * 1024
    else:                                        # v7x: 64 MiB VMEM per TC
        tile, vlim = 2048, 40 * 1024 * 1024
    if tile_n is not None:
        tile = max(LANES, LANES * ((int(tile_n) + LANES - 1) // LANES))
    return tile, vlim


def _pde_kernel(x_ref, w_ref, b3_ref, out_ref):
    # x_ref:   (2, T)   row 0 = t coordinate, row 1 = x coordinate (samples on lanes)
    # w_ref:   (Hp, 14) packed per-hidden constants (see wrapper for column order)
    # b3_ref:  (1,)     SMEM scalar
    # out_ref: (2, T)   row 0 = f(x), row 1 = pde residual
    hp = w_ref.shape[0]
    t = x_ref.shape[1]

    xt = x_ref[0:1, :]                          # (1, T)
    xx = x_ref[1:2, :]                          # (1, T)
    # hoisted sublane broadcasts (JAX does not CSE broadcast_in_dim)
    xt_b = jnp.broadcast_to(xt, (hp, t))
    xx_b = jnp.broadcast_to(xx, (hp, t))

    w = w_ref[...]                              # (Hp, 14) resident
    w1t, w1x, bb1 = w[:, 0:1], w[:, 1:2], w[:, 2:3]
    w2t, w2x, bb2 = w[:, 3:4], w[:, 4:5], w[:, 5:6]
    w3 = w[:, 6:7]
    q1t, q1x = w[:, 7:8], w[:, 8:9]             # w1t*w3, w1x*w3
    q2t, q2x = w[:, 9:10], w[:, 10:11]          # w2t*w3, w2x*w3
    qc1, qc2, qc3 = w[:, 11:12], w[:, 12:13], w[:, 13:14]  # 0.5σ²-scaled 2nd-deriv rows

    # ---- affine layers: K=2 contraction as VPU broadcast FMAs (no MXU) ----
    u = w1t * xt_b + w1x * xx_b + bb1           # (Hp, T)
    v = w2t * xt_b + w2x * xx_b + bb2           # (Hp, T)

    s1 = jax.nn.sigmoid(u)
    s2 = jax.nn.sigmoid(v)

    # ---- analytic sigmoid derivatives (shared sub-expressions hoisted) ----
    d1 = s1 - s1 * s1                           # sigma'(u)
    d2 = s2 - s2 * s2                           # sigma'(v)
    a1 = d1 * s2                                # sigma'(u) * sigma(v)
    a2 = s1 * d2                                # sigma(u)  * sigma'(v)
    e1 = a1 - 2.0 * (a1 * s1)                   # sigma''(u) * sigma(v)
    e2 = a2 - 2.0 * (a2 * s2)                   # sigma(u)   * sigma''(v)
    p12 = d1 * d2                               # sigma'(u)  * sigma'(v)

    # per-hidden integrands; w3 (and 0.5 sigma^2, 2.0) are pre-folded into the q*/qc* rows
    f_int = (s1 * s2) * w3                                            # f(x)
    dx_int = a1 * q1x + a2 * q2x                                      # df/dx
    fu_int = a1 * q1t + a2 * q2t + e1 * qc1 + p12 * qc2 + e2 * qc3    # df/dt + 0.5σ² d²f/dx²

    # hidden axis = sublane axis: cheap cross-vreg adds + one 8-row reduce (no lane sums)
    f_val = jnp.sum(f_int, axis=0, keepdims=True) + b3_ref[0]         # (1, T)
    df_dx = jnp.sum(dx_int, axis=0, keepdims=True)                    # (1, T)
    fused = jnp.sum(fu_int, axis=0, keepdims=True)                    # (1, T)

    pde = (B_F * (xx * xx) + fused + B * xx * df_dx
           - (C * C) / (4.0 * C_F) * (df_dx * df_dx))                 # (1, T)

    # lane-dense row stores into the packed (2, T) output slab
    out_ref[0:1, :] = f_val
    out_ref[1:2, :] = pde


def model_pde_forward(x, w1, b1, w2, b2, w3, b3, tile_n=None):
    """Returns (output (N,1), pde (N,)) matching Model_PDE.forward semantics.

    Weights are (in_features, out_features), i.e. transposed vs. torch storage.
    """
    n = int(x.shape[0])
    h = int(w1.shape[1])
    hp = SUBLANES * ((h + SUBLANES - 1) // SUBLANES)   # hidden lives on sublanes: 100 -> 104

    f32 = jnp.float32
    w1 = jnp.asarray(w1, f32)                  # (2, H)
    w2 = jnp.asarray(w2, f32)
    b1v = jnp.asarray(b1, f32).reshape(-1)     # (H,)
    b2v = jnp.asarray(b2, f32).reshape(-1)
    w3v = jnp.asarray(w3, f32).reshape(-1)     # (H,)
    b3s = jnp.asarray(b3, f32).reshape(-1)[:1]  # (1,) SMEM scalar

    w1t, w1x = w1[0], w1[1]
    w2t, w2x = w2[0], w2[1]

    hs2 = 0.5 * SIGMA * SIGMA
    # column order must match _pde_kernel
    cols = (w1t, w1x, b1v, w2t, w2x, b2v, w3v,
            w1t * w3v, w1x * w3v, w2t * w3v, w2x * w3v,
            hs2 * w1x * w1x * w3v,
            (SIGMA * SIGMA) * w1x * w2x * w3v,
            hs2 * w2x * w2x * w3v)
    wpack = jnp.stack(cols, axis=1)                     # (H, 14)
    wpack = jnp.pad(wpack, ((0, hp - h), (0, 0)))       # zero rows: w3 pad = 0 -> exact
    n_cols = wpack.shape[1]

    # tile over the sample axis, which now sits on lanes -> tile multiple of 128
    tile_cfg, vlim = _pick_config(tile_n)
    n128 = LANES * pl.cdiv(n, LANES)
    tile = min(tile_cfg, n128)
    n_pad = tile * pl.cdiv(n, tile)

    # samples-on-lanes input layout: (2, n_pad)
    xp = jnp.pad(jnp.asarray(x, f32).T, ((0, 0), (0, n_pad - n)))

    packed = pl.pallas_call(
        _pde_kernel,
        out_shape=jax.ShapeDtypeStruct((2, n_pad), f32),
        grid=(n_pad // tile,),
        in_specs=[
            pl.BlockSpec((2, tile), lambda i: (0, i)),            # x tile
            pl.BlockSpec((hp, n_cols), lambda i: (0, 0)),         # resident packed weights
            pl.BlockSpec(memory_space=pltpu.MemorySpace.SMEM),    # b3 scalar
        ],
        out_specs=pl.BlockSpec((2, tile), lambda i: (0, i)),
        compiler_params=pltpu.CompilerParams(
            dimension_semantics=("parallel",),                    # shards across v7x's 2 TCs
            vmem_limit_bytes=vlim,
        ),
    )(xp, wpack, b3s)

    out = packed[0, :n][:, None]
    pde = packed[1, :n]
    return out, pde


# ---------------- pure-JAX reference (autodiff, mirrors the torch grad loops) ----------------
def _ref_forward(x, w1, b1, w2, b2, w3, b3):
    def f_single(xi):
        h1 = jax.nn.sigmoid(xi @ w1 + b1)
        h2 = jax.nn.sigmoid(xi @ w2 + b2)
        return ((h1 * h2) @ w3 + b3)[0, 0]

    out = jax.vmap(f_single)(x)[:, None]
    grad_f = jax.vmap(jax.grad(f_single))(x)             # (N, 2)
    hess = jax.vmap(jax.hessian(f_single))(x)            # (N, 2, 2)
    df_dx, df_dt, df_dxdx = grad_f[:, 1], grad_f[:, 0], hess[:, 1, 1]
    x1 = x[:, 1]
    pde = (B_F * x1 ** 2 + df_dt + 0.5 * SIGMA ** 2 * df_dxdx
           + B * x1 * df_dx - C ** 2 / (4.0 * C_F) * df_dx ** 2)
    return out, pde


if __name__ == "__main__":
    key = jax.random.PRNGKey(0)
    kx, k1, k2, k3, k4, k5, k6, kx2 = jax.random.split(key, 8)

    N = 20  # module-level example uses torch.randn(20, 2)
    x = jax.random.normal(kx, (N, IN_DIM), dtype=jnp.float32)

    # Deterministic PyTorch-style Linear init: U(-1/sqrt(fan_in), 1/sqrt(fan_in)).
    lim1 = 1.0 / jnp.sqrt(float(IN_DIM))
    lim3 = 1.0 / jnp.sqrt(float(HIDDEN))
    w1 = jax.random.uniform(k1, (IN_DIM, HIDDEN), jnp.float32, -lim1, lim1)
    b1 = jax.random.uniform(k2, (HIDDEN,), jnp.float32, -lim1, lim1)
    w2 = jax.random.uniform(k3, (IN_DIM, HIDDEN), jnp.float32, -lim1, lim1)
    b2 = jax.random.uniform(k4, (HIDDEN,), jnp.float32, -lim1, lim1)
    w3 = jax.random.uniform(k5, (HIDDEN, 1), jnp.float32, -lim3, lim3)
    b3 = jax.random.uniform(k6, (1, 1), jnp.float32, -lim3, lim3)

    out, pde = model_pde_forward(x, w1, b1, w2, b2, w3, b3)
    jax.block_until_ready((out, pde))

    out_ref, pde_ref = _ref_forward(x, w1, b1, w2, b2, w3, b3)
    assert out.shape == (N, 1) and pde.shape == (N,)
    assert jnp.allclose(out, out_ref, atol=1e-4, rtol=1e-4)
    assert jnp.allclose(pde, pde_ref, atol=1e-4, rtol=1e-4)

    # second check: multi-step grid + lane-padding path (N not a multiple of the tile)
    N2 = 1000
    x2 = jax.random.normal(kx2, (N2, IN_DIM), dtype=jnp.float32)
    out2, pde2 = model_pde_forward(x2, w1, b1, w2, b2, w3, b3, tile_n=256)
    jax.block_until_ready((out2, pde2))
    out2_ref, pde2_ref = _ref_forward(x2, w1, b1, w2, b2, w3, b3)
    assert jnp.allclose(out2, out2_ref, atol=2e-4, rtol=2e-4)
    assert jnp.allclose(pde2, pde2_ref, atol=2e-4, rtol=2e-4)

    print("KERNEL_OK")
</pallas_src>

<mosaic_0001>
module attributes {stable_mosaic.version = 11 : i64} {
  func.func @_pde_kernel(%arg0: i32, %arg1: memref<2x128xf32, #tpu.memory_space<vmem>>, %arg2: memref<104x14xf32, #tpu.memory_space<vmem>>, %arg3: memref<1xf32, #tpu.memory_space<smem>>, %arg4: memref<2x128xf32, #tpu.memory_space<vmem>>) attributes {dimension_semantics = [#tpu.dimension_semantics<parallel>], iteration_bounds = array<i64: 1>, scalar_prefetch = 0 : i64, scratch_operands = 0 : i64, tpu.core_type = #tpu.core_type<tc>, window_params = [{transform_indices = @transform_0, window_bounds = array<i64: 2, 128>}, {pipeline_mode = #tpu.pipeline_mode<synchronous>, transform_indices = @transform_1, window_bounds = array<i64: 104, 14>}, {transform_indices = @transform_2, window_bounds = array<i64: 1>}, {transform_indices = @transform_3, window_bounds = array<i64: 2, 128>}]} {
    %c0 = arith.constant 0 : index
    %c0_0 = arith.constant 0 : index
    %0 = vector.load %arg1[%c0, %c0_0] : memref<2x128xf32, #tpu.memory_space<vmem>>, vector<1x128xf32>
    %c1 = arith.constant 1 : index
    %c0_1 = arith.constant 0 : index
    %1 = vector.load %arg1[%c1, %c0_1] : memref<2x128xf32, #tpu.memory_space<vmem>>, vector<1x128xf32>
    %2 = vector.shape_cast %0 : vector<1x128xf32> to vector<1x128xf32>
    %3 = vector.broadcast %2 : vector<1x128xf32> to vector<104x128xf32>
    %4 = vector.shape_cast %1 : vector<1x128xf32> to vector<1x128xf32>
    %5 = vector.broadcast %4 : vector<1x128xf32> to vector<104x128xf32>
    %c0_2 = arith.constant 0 : index
    %c0_3 = arith.constant 0 : index
    %6 = vector.load %arg2[%c0_2, %c0_3] : memref<104x14xf32, #tpu.memory_space<vmem>>, vector<104x14xf32>
    %7 = vector.extract_strided_slice %6 {offsets = [0, 0], sizes = [104, 1], strides = [1, 1]} : vector<104x14xf32> to vector<104x1xf32>
    %8 = vector.extract_strided_slice %6 {offsets = [0, 1], sizes = [104, 1], strides = [1, 1]} : vector<104x14xf32> to vector<104x1xf32>
    %9 = vector.extract_strided_slice %6 {offsets = [0, 2], sizes = [104, 1], strides = [1, 1]} : vector<104x14xf32> to vector<104x1xf32>
    %10 = vector.extract_strided_slice %6 {offsets = [0, 3], sizes = [104, 1], strides = [1, 1]} : vector<104x14xf32> to vector<104x1xf32>
    %11 = vector.extract_strided_slice %6 {offsets = [0, 4], sizes = [104, 1], strides = [1, 1]} : vector<104x14xf32> to vector<104x1xf32>
    %12 = vector.extract_strided_slice %6 {offsets = [0, 5], sizes = [104, 1], strides = [1, 1]} : vector<104x14xf32> to vector<104x1xf32>
    %13 = vector.extract_strided_slice %6 {offsets = [0, 6], sizes = [104, 1], strides = [1, 1]} : vector<104x14xf32> to vector<104x1xf32>
    %14 = vector.extract_strided_slice %6 {offsets = [0, 7], sizes = [104, 1], strides = [1, 1]} : vector<104x14xf32> to vector<104x1xf32>
    %15 = vector.extract_strided_slice %6 {offsets = [0, 8], sizes = [104, 1], strides = [1, 1]} : vector<104x14xf32> to vector<104x1xf32>
    %16 = vector.extract_strided_slice %6 {offsets = [0, 9], sizes = [104, 1], strides = [1, 1]} : vector<104x14xf32> to vector<104x1xf32>
    %17 = vector.extract_strided_slice %6 {offsets = [0, 10], sizes = [104, 1], strides = [1, 1]} : vector<104x14xf32> to vector<104x1xf32>
    %18 = vector.extract_strided_slice %6 {offsets = [0, 11], sizes = [104, 1], strides = [1, 1]} : vector<104x14xf32> to vector<104x1xf32>
    %19 = vector.extract_strided_slice %6 {offsets = [0, 12], sizes = [104, 1], strides = [1, 1]} : vector<104x14xf32> to vector<104x1xf32>
    %20 = vector.extract_strided_slice %6 {offsets = [0, 13], sizes = [104, 1], strides = [1, 1]} : vector<104x14xf32> to vector<104x1xf32>
    %21 = vector.broadcast %7 : vector<104x1xf32> to vector<104x128xf32>
    %22 = arith.mulf %21, %3 : vector<104x128xf32>
    %23 = vector.broadcast %8 : vector<104x1xf32> to vector<104x128xf32>
    %24 = arith.mulf %23, %5 : vector<104x128xf32>
    %25 = arith.addf %22, %24 : vector<104x128xf32>
    %26 = vector.broadcast %9 : vector<104x1xf32> to vector<104x128xf32>
    %27 = arith.addf %25, %26 : vector<104x128xf32>
    %28 = vector.broadcast %10 : vector<104x1xf32> to vector<104x128xf32>
    %29 = arith.mulf %28, %3 : vector<104x128xf32>
    %30 = vector.broadcast %11 : vector<104x1xf32> to vector<104x128xf32>
    %31 = arith.mulf %30, %5 : vector<104x128xf32>
    %32 = arith.addf %29, %31 : vector<104x128xf32>
    %33 = vector.broadcast %12 : vector<104x1xf32> to vector<104x128xf32>
    %34 = arith.addf %32, %33 : vector<104x128xf32>
    %35 = arith.negf %27 : vector<104x128xf32>
    %36 = math.exp %35 : vector<104x128xf32>
    %cst = arith.constant 1.000000e+00 : f32
    %37 = vector.broadcast %cst : f32 to vector<104x128xf32>
    %38 = arith.addf %37, %36 : vector<104x128xf32>
    %39 = arith.divf %37, %38 : vector<104x128xf32>
    %40 = arith.negf %34 : vector<104x128xf32>
    %41 = math.exp %40 : vector<104x128xf32>
    %cst_4 = arith.constant 1.000000e+00 : f32
    %42 = vector.broadcast %cst_4 : f32 to vector<104x128xf32>
    %43 = arith.addf %42, %41 : vector<104x128xf32>
    %44 = arith.divf %42, %43 : vector<104x128xf32>
    %45 = arith.mulf %39, %39 : vector<104x128xf32>
    %46 = arith.subf %39, %45 : vector<104x128xf32>
    %47 = arith.mulf %44, %44 : vector<104x128xf32>
    %48 = arith.subf %44, %47 : vector<104x128xf32>
    %49 = arith.mulf %46, %44 : vector<104x128xf32>
    %50 = arith.mulf %39, %48 : vector<104x128xf32>
    %51 = arith.mulf %49, %39 : vector<104x128xf32>
    %cst_5 = arith.constant 2.000000e+00 : f32
    %52 = vector.broadcast %cst_5 : f32 to vector<104x128xf32>
    %53 = arith.mulf %52, %51 : vector<104x128xf32>
    %54 = arith.subf %49, %53 : vector<104x128xf32>
    %55 = arith.mulf %50, %44 : vector<104x128xf32>
    %cst_6 = arith.constant 2.000000e+00 : f32
    %56 = vector.broadcast %cst_6 : f32 to vector<104x128xf32>
    %57 = arith.mulf %56, %55 : vector<104x128xf32>
    %58 = arith.subf %50, %57 : vector<104x128xf32>
    %59 = arith.mulf %46, %48 : vector<104x128xf32>
    %60 = arith.mulf %39, %44 : vector<104x128xf32>
    %61 = vector.broadcast %13 : vector<104x1xf32> to vector<104x128xf32>
    %62 = arith.mulf %60, %61 : vector<104x128xf32>
    %63 = vector.broadcast %15 : vector<104x1xf32> to vector<104x128xf32>
    %64 = arith.mulf %49, %63 : vector<104x128xf32>
    %65 = vector.broadcast %17 : vector<104x1xf32> to vector<104x128xf32>
    %66 = arith.mulf %50, %65 : vector<104x128xf32>
    %67 = arith.addf %64, %66 : vector<104x128xf32>
    %68 = vector.broadcast %14 : vector<104x1xf32> to vector<104x128xf32>
    %69 = arith.mulf %49, %68 : vector<104x128xf32>
    %70 = vector.broadcast %16 : vector<104x1xf32> to vector<104x128xf32>
    %71 = arith.mulf %50, %70 : vector<104x128xf32>
    %72 = arith.addf %69, %71 : vector<104x128xf32>
    %73 = vector.broadcast %18 : vector<104x1xf32> to vector<104x128xf32>
    %74 = arith.mulf %54, %73 : vector<104x128xf32>
    %75 = arith.addf %72, %74 : vector<104x128xf32>
    %76 = vector.broadcast %19 : vector<104x1xf32> to vector<104x128xf32>
    %77 = arith.mulf %59, %76 : vector<104x128xf32>
    %78 = arith.addf %75, %77 : vector<104x128xf32>
    %79 = vector.broadcast %20 : vector<104x1xf32> to vector<104x128xf32>
    %80 = arith.mulf %58, %79 : vector<104x128xf32>
    %81 = arith.addf %78, %80 : vector<104x128xf32>
    %cst_7 = arith.constant dense<0.000000e+00> : vector<128xf32>
    %82 = vector.multi_reduction <add>, %62, %cst_7 [0] : vector<104x128xf32> to vector<128xf32>
    %83 = vector.shape_cast %82 : vector<128xf32> to vector<1x128xf32>
    %c0_8 = arith.constant 0 : index
    %84 = memref.load %arg3[%c0_8] : memref<1xf32, #tpu.memory_space<smem>>
    %85 = vector.broadcast %84 : f32 to vector<1x128xf32>
    %86 = arith.addf %83, %85 : vector<1x128xf32>
    %cst_9 = arith.constant dense<0.000000e+00> : vector<128xf32>
    %87 = vector.multi_reduction <add>, %67, %cst_9 [0] : vector<104x128xf32> to vector<128xf32>
    %88 = vector.shape_cast %87 : vector<128xf32> to vector<1x128xf32>
    %cst_10 = arith.constant dense<0.000000e+00> : vector<128xf32>
    %89 = vector.multi_reduction <add>, %81, %cst_10 [0] : vector<104x128xf32> to vector<128xf32>
    %90 = vector.shape_cast %89 : vector<128xf32> to vector<1x128xf32>
    %91 = arith.mulf %1, %1 : vector<1x128xf32>
    %cst_11 = arith.constant 5.000000e-01 : f32
    %92 = vector.broadcast %cst_11 : f32 to vector<1x128xf32>
    %93 = arith.mulf %92, %91 : vector<1x128xf32>
    %94 = arith.addf %93, %90 : vector<1x128xf32>
    %cst_12 = arith.constant 5.000000e-01 : f32
    %95 = vector.broadcast %cst_12 : f32 to vector<1x128xf32>
    %96 = arith.mulf %95, %1 : vector<1x128xf32>
    %97 = arith.mulf %96, %88 : vector<1x128xf32>
    %98 = arith.addf %94, %97 : vector<1x128xf32>
    %99 = arith.mulf %88, %88 : vector<1x128xf32>
    %cst_13 = arith.constant 0.0694444477 : f32
    %100 = vector.broadcast %cst_13 : f32 to vector<1x128xf32>
    %101 = arith.mulf %100, %99 : vector<1x128xf32>
    %102 = arith.subf %98, %101 : vector<1x128xf32>
    %c0_14 = arith.constant 0 : index
    %c0_15 = arith.constant 0 : index
    %103 = vector.load %arg4[%c0_14, %c0_15] : memref<2x128xf32, #tpu.memory_space<vmem>>, vector<1x128xf32>
    tpu.vector_store %arg4[%c0_14, %c0_15], %86 {strides = array<i32>} : memref<2x128xf32, #tpu.memory_space<vmem>>, vector<1x128xf32>,
    %c1_16 = arith.constant 1 : index
    %c0_17 = arith.constant 0 : index
    %104 = vector.load %arg4[%c1_16, %c0_17] : memref<2x128xf32, #tpu.memory_space<vmem>>, vector<1x128xf32>
    tpu.vector_store %arg4[%c1_16, %c0_17], %102 {strides = array<i32>} : memref<2x128xf32, #tpu.memory_space<vmem>>, vector<1x128xf32>,
    return
  }
  func.func @transform_0(%arg0: i32) -> (i32, i32) {
    %c0_i32 = arith.constant 0 : i32
    %c0_i32_0 = arith.constant 0 : i32
    return %c0_i32, %arg0 : i32, i32
  }
  func.func @transform_1(%arg0: i32) -> (i32, i32) {
    %c0_i32 = arith.constant 0 : i32
    %c0_i32_0 = arith.constant 0 : i32
    %c0_i32_1 = arith.constant 0 : i32
    return %c0_i32, %c0_i32_0 : i32, i32
  }
  func.func @transform_2(%arg0: i32) -> i32 {
    %c0_i32 = arith.constant 0 : i32
    %c0_i32_0 = arith.constant 0 : i32
    return %c0_i32 : i32
  }
  func.func @transform_3(%arg0: i32) -> (i32, i32) {
    %c0_i32 = arith.constant 0 : i32
    %c0_i32_0 = arith.constant 0 : i32
    return %c0_i32, %arg0 : i32, i32
  }
}

</mosaic_0001>

<llo_original>
// kernel: tpu_custom_call.1
$region0: #{tpu_custom_call.1}
  #allocation0 [shape = 'u32[]', space=smem, size = 0x4, offset = 0x4, fixed_abs, tag = 'smem constant byte address 0x4 - core index']
  #allocation1 [shape = 'u32[144,128]{1,0:T(1,128)}', space=vmem, size = 0x12000, scoped, tag = 'internal scratch']
  #allocation2 [shape = 'f32[1]{0:T(128)S(6)}', space=smem, size = 0x200, scoped, tag = 'scoped memory for tpu_custom_call.1']
  %s0 = inlined_call_operand.vmem [shape: f32[2,128], index: 0, kind: input, shape index: {}]
  %s1 = inlined_call_operand.vmem [shape: f32[104,14], index: 1, kind: input, shape index: {}]
  %s2 = inlined_call_operand.<no memory space> [shape: f32[1], index: 2, kind: input, shape index: {}]
  %s3 = inlined_call_operand.hbm [shape: f32[2,128], index: 3, kind: output, shape index: {}]
  %s4 = sld [smem:[#allocation0]]
  $region22: #{tpu_custom_call.1} parent=0
    _
  %s6 = ssub.s32 1, %s4
  %s7 = scalar_select 0, %s6, %s4
  %8 = sst [smem:[#allocation2]] %s2
  $region1: #{tpu_custom_call.1} parent=0
    #allocation3 [shape = 'u8[1024]{0}', space=vmem, size = 0x400, scoped, tag = 'output window, operand 0, single buffered']
    #allocation4 [shape = 's32[1]{0}', space=sflag, size = 0x4, scoped, tag = 'scoped memory for tpu_custom_call.1']
    %9 = vsyncpa [#allocation4], 0
    // Predicated region
    $region2: #{tpu_custom_call.1} parent=1 // pred_check
      _
    $region3: #{tpu_custom_call.1} parent=1 // pred_check_branch
      %11 = sbr.rel (0) target = $region5
    $region4: #{tpu_custom_call.1} parent=1 // pred_region
      _
    $region5: #{tpu_custom_call.1} parent=1 // pred_fallthru
      _
    // Predicated region
    $region6: #{tpu_custom_call.1} parent=1 // pred_check
      _
    $region7: #{tpu_custom_call.1} parent=1 // pred_check_branch
      %13 = sbr.rel (0) target = $region9
    $region8: #{tpu_custom_call.1} parent=1 // pred_region
      _
    $region9: #{tpu_custom_call.1} parent=1 // pred_fallthru
      _
    // Predicated region
    $region10: #{tpu_custom_call.1} parent=1 // pred_check
      _
    $region11: #{tpu_custom_call.1} parent=1 // pred_check_branch
      %15 = sbr.rel (0) target = $region13
    $region12: #{tpu_custom_call.1} parent=1 // pred_region
      _
    $region13: #{tpu_custom_call.1} parent=1 // pred_fallthru
      _
    %v16 = vld [vmem:[%s0] sm:$0x1]
    %v17 = vld [vmem:[%s0 + $0x1] sm:$0x1]
    %v18 = vlaneseq
    %v19 = vshrl.u32 %v18, 7
    %v20 = vsub.s32 0, %v19
    %v21 = vrot.slane %v16, %v20
    %v22 = vlaneseq
    %v23 = vshrl.u32 %v22, 7
    %v24 = vsub.s32 0, %v23
    %v25 = vrot.slane %v17, %v24
    %v26 = vld [vmem:[%s1] sm:$0xff]
    %v27 = vld [vmem:[%s1 + $0x8] sm:$0xff]
    %v28 = vld [vmem:[%s1 + $0x10] sm:$0xff]
    %v29 = vld [vmem:[%s1 + $0x18] sm:$0xff]
    %v30 = vld [vmem:[%s1 + $0x20] sm:$0xff]
    %v31 = vld [vmem:[%s1 + $0x28] sm:$0xff]
    %v32 = vld [vmem:[%s1 + $0x30] sm:$0xff]
    %v33 = vld [vmem:[%s1 + $0x38] sm:$0xff]
    %v34 = vld [vmem:[%s1 + $0x40] sm:$0xff]
    %v35 = vld [vmem:[%s1 + $0x48] sm:$0xff]
    %v36 = vld [vmem:[%s1 + $0x50] sm:$0xff]
    %v37 = vld [vmem:[%s1 + $0x58] sm:$0xff]
    %v38 = vld [vmem:[%s1 + $0x60] sm:$0xff]
    %40 = vset.pattern.permute.xlu0 0
    %41 = vperm.xlu0 %40, %v26
    %v42 = vpop.permute.xlu0 %41
    %45 = vset.pattern.permute.xlu0 0
    %46 = vperm.xlu0 %45, %v27
    %v47 = vpop.permute.xlu0 %46
    %50 = vset.pattern.permute.xlu0 0
    %51 = vperm.xlu0 %50, %v28
    %v52 = vpop.permute.xlu0 %51
    %55 = vset.pattern.permute.xlu0 0
    %56 = vperm.xlu0 %55, %v29
    %v57 = vpop.permute.xlu0 %56
    %60 = vset.pattern.permute.xlu0 0
    %61 = vperm.xlu0 %60, %v30
    %v62 = vpop.permute.xlu0 %61
    %65 = vset.pattern.permute.xlu0 0
    %66 = vperm.xlu0 %65, %v31
    %v67 = vpop.permute.xlu0 %66
    %70 = vset.pattern.permute.xlu0 0
    %71 = vperm.xlu0 %70, %v32
    %v72 = vpop.permute.xlu0 %71
    %75 = vset.pattern.permute.xlu0 0
    %76 = vperm.xlu0 %75, %v33
    %v77 = vpop.permute.xlu0 %76
    %80 = vset.pattern.permute.xlu0 0
    %81 = vperm.xlu0 %80, %v34
    %v82 = vpop.permute.xlu0 %81
    %85 = vset.pattern.permute.xlu0 0
    %86 = vperm.xlu0 %85, %v35
    %v87 = vpop.permute.xlu0 %86
    %90 = vset.pattern.permute.xlu0 0
    %91 = vperm.xlu0 %90, %v36
    %v92 = vpop.permute.xlu0 %91
    %95 = vset.pattern.permute.xlu0 0
    %96 = vperm.xlu0 %95, %v37
    %v97 = vpop.permute.xlu0 %96
    %100 = vset.pattern.permute.xlu0 0
    %101 = vperm.xlu0 %100, %v38
    %v102 = vpop.permute.xlu0 %101
    %v104 = vmul.f32 %v42, %v21
    %v105 = vmul.f32 %v47, %v21
    %v106 = vmul.f32 %v52, %v21
    %v107 = vmul.f32 %v57, %v21
    %v108 = vmul.f32 %v62, %v21
    %v109 = vmul.f32 %v67, %v21
    %v110 = vmul.f32 %v72, %v21
    %v111 = vmul.f32 %v77, %v21
    %v112 = vmul.f32 %v82, %v21
    %v113 = vmul.f32 %v87, %v21
    %v114 = vmul.f32 %v92, %v21
    %v115 = vmul.f32 %v97, %v21
    %v116 = vmul.f32 %v102, %v21
    %117 = vset.pattern.permute.xlu0 1
    %118 = vperm.xlu0 %117, %v26
    %v119 = vpop.permute.xlu0 %118
    %121 = vset.pattern.permute.xlu0 1
    %122 = vperm.xlu0 %121, %v27
    %v123 = vpop.permute.xlu0 %122
    %125 = vset.pattern.permute.xlu0 1
    %126 = vperm.xlu0 %125, %v28
    %v127 = vpop.permute.xlu0 %126
    %129 = vset.pattern.permute.xlu0 1
    %130 = vperm.xlu0 %129, %v29
    %v131 = vpop.permute.xlu0 %130
    %133 = vset.pattern.permute.xlu0 1
    %134 = vperm.xlu0 %133, %v30
    %v135 = vpop.permute.xlu0 %134
    %137 = vset.pattern.permute.xlu0 1
    %138 = vperm.xlu0 %137, %v31
    %v139 = vpop.permute.xlu0 %138
    %141 = vset.pattern.permute.xlu0 1
    %142 = vperm.xlu0 %141, %v32
    %v143 = vpop.permute.xlu0 %142
    %145 = vset.pattern.permute.xlu0 1
    %146 = vperm.xlu0 %145, %v33
    %v147 = vpop.permute.xlu0 %146
    %149 = vset.pattern.permute.xlu0 1
    %150 = vperm.xlu0 %149, %v34
    %v151 = vpop.permute.xlu0 %150
    %153 = vset.pattern.permute.xlu0 1
    %154 = vperm.xlu0 %153, %v35
    %v155 = vpop.permute.xlu0 %154
    %157 = vset.pattern.permute.xlu0 1
    %158 = vperm.xlu0 %157, %v36
    %v159 = vpop.permute.xlu0 %158
    %161 = vset.pattern.permute.xlu0 1
    %162 = vperm.xlu0 %161, %v37
    %v163 = vpop.permute.xlu0 %162
    %165 = vset.pattern.permute.xlu0 1
    %166 = vperm.xlu0 %165, %v38
    %v167 = vpop.permute.xlu0 %166
    %v169 = vmul.f32 %v119, %v25
    %v170 = vmul.f32 %v123, %v25
    %v171 = vmul.f32 %v127, %v25
    %v172 = vmul.f32 %v131, %v25
    %v173 = vmul.f32 %v135, %v25
    %v174 = vmul.f32 %v139, %v25
    %v175 = vmul.f32 %v143, %v25
    %v176 = vmul.f32 %v147, %v25
    %v177 = vmul.f32 %v151, %v25
    %v178 = vmul.f32 %v155, %v25
    %v179 = vmul.f32 %v159, %v25
    %v180 = vmul.f32 %v163, %v25
    %v181 = vmul.f32 %v167, %v25
    %v182 = vadd.f32 %v104, %v169
    %v183 = vadd.f32 %v105, %v170
    %v184 = vadd.f32 %v106, %v171
    %v185 = vadd.f32 %v107, %v172
    %v186 = vadd.f32 %v108, %v173
    %v187 = vadd.f32 %v109, %v174
    %v188 = vadd.f32 %v110, %v175
    %v189 = vadd.f32 %v111, %v176
    %v190 = vadd.f32 %v112, %v177
    %v191 = vadd.f32 %v113, %v178
    %v192 = vadd.f32 %v114, %v179
    %v193 = vadd.f32 %v115, %v180
    %v194 = vadd.f32 %v116, %v181
    %195 = vset.pattern.permute.xlu0 2
    %196 = vperm.xlu0 %195, %v26
    %v197 = vpop.permute.xlu0 %196
    %199 = vset.pattern.permute.xlu0 2
    %200 = vperm.xlu0 %199, %v27
    %v201 = vpop.permute.xlu0 %200
    %203 = vset.pattern.permute.xlu0 2
    %204 = vperm.xlu0 %203, %v28
    %v205 = vpop.permute.xlu0 %204
    %207 = vset.pattern.permute.xlu0 2
    %208 = vperm.xlu0 %207, %v29
    %v209 = vpop.permute.xlu0 %208
    %211 = vset.pattern.permute.xlu0 2
    %212 = vperm.xlu0 %211, %v30
    %v213 = vpop.permute.xlu0 %212
    %215 = vset.pattern.permute.xlu0 2
    %216 = vperm.xlu0 %215, %v31
    %v217 = vpop.permute.xlu0 %216
    %219 = vset.pattern.permute.xlu0 2
    %220 = vperm.xlu0 %219, %v32
    %v221 = vpop.permute.xlu0 %220
    %223 = vset.pattern.permute.xlu0 2
    %224 = vperm.xlu0 %223, %v33
    %v225 = vpop.permute.xlu0 %224
    %227 = vset.pattern.permute.xlu0 2
    %228 = vperm.xlu0 %227, %v34
    %v229 = vpop.permute.xlu0 %228
    %231 = vset.pattern.permute.xlu0 2
    %232 = vperm.xlu0 %231, %v35
    %v233 = vpop.permute.xlu0 %232
    %235 = vset.pattern.permute.xlu0 2
    %236 = vperm.xlu0 %235, %v36
    %v237 = vpop.permute.xlu0 %236
    %239 = vset.pattern.permute.xlu0 2
    %240 = vperm.xlu0 %239, %v37
    %v241 = vpop.permute.xlu0 %240
    %243 = vset.pattern.permute.xlu0 2
    %244 = vperm.xlu0 %243, %v38
    %v245 = vpop.permute.xlu0 %244
    %v247 = vadd.f32 %v182, %v197
    %v248 = vadd.f32 %v183, %v201
    %v249 = vadd.f32 %v184, %v205
    %v250 = vadd.f32 %v185, %v209
    %v251 = vadd.f32 %v186, %v213
    %v252 = vadd.f32 %v187, %v217
    %v253 = vadd.f32 %v188, %v221
    %v254 = vadd.f32 %v189, %v225
    %v255 = vadd.f32 %v190, %v229
    %v256 = vadd.f32 %v191, %v233
    %v257 = vadd.f32 %v192, %v237
    %v258 = vadd.f32 %v193, %v241
    %v259 = vadd.f32 %v194, %v245
    %260 = vset.pattern.permute.xlu0 3
    %261 = vperm.xlu0 %260, %v26
    %v262 = vpop.permute.xlu0 %261
    %264 = vset.pattern.permute.xlu0 3
    %265 = vperm.xlu0 %264, %v27
    %v266 = vpop.permute.xlu0 %265
    %268 = vset.pattern.permute.xlu0 3
    %269 = vperm.xlu0 %268, %v28
    %v270 = vpop.permute.xlu0 %269
    %272 = vset.pattern.permute.xlu0 3
    %273 = vperm.xlu0 %272, %v29
    %v274 = vpop.permute.xlu0 %273
    %276 = vset.pattern.permute.xlu0 3
    %277 = vperm.xlu0 %276, %v30
    %v278 = vpop.permute.xlu0 %277
    %280 = vset.pattern.permute.xlu0 3
    %281 = vperm.xlu0 %280, %v31
    %v282 = vpop.permute.xlu0 %281
    %284 = vset.pattern.permute.xlu0 3
    %285 = vperm.xlu0 %284, %v32
    %v286 = vpop.permute.xlu0 %285
    %288 = vset.pattern.permute.xlu0 3
    %289 = vperm.xlu0 %288, %v33
    %v290 = vpop.permute.xlu0 %289
    %292 = vset.pattern.permute.xlu0 3
    %293 = vperm.xlu0 %292, %v34
    %v294 = vpop.permute.xlu0 %293
    %296 = vset.pattern.permute.xlu0 3
    %297 = vperm.xlu0 %296, %v35
    %v298 = vpop.permute.xlu0 %297
    %300 = vset.pattern.permute.xlu0 3
    %301 = vperm.xlu0 %300, %v36
    %v302 = vpop.permute.xlu0 %301
    %304 = vset.pattern.permute.xlu0 3
    %305 = vperm.xlu0 %304, %v37
    %v306 = vpop.permute.xlu0 %305
    %308 = vset.pattern.permute.xlu0 3
    %309 = vperm.xlu0 %308, %v38
    %v310 = vpop.permute.xlu0 %309
    %v312 = vmul.f32 %v262, %v21
    %v313 = vmul.f32 %v266, %v21
    %v314 = vmul.f32 %v270, %v21
    %v315 = vmul.f32 %v274, %v21
    %v316 = vmul.f32 %v278, %v21
    %v317 = vmul.f32 %v282, %v21
    %v318 = vmul.f32 %v286, %v21
    %v319 = vmul.f32 %v290, %v21
    %v320 = vmul.f32 %v294, %v21
    %v321 = vmul.f32 %v298, %v21
    %v322 = vmul.f32 %v302, %v21
    %v323 = vmul.f32 %v306, %v21
    %v324 = vmul.f32 %v310, %v21
    %325 = vset.pattern.permute.xlu0 4
    %326 = vperm.xlu0 %325, %v26
    %v327 = vpop.permute.xlu0 %326
    %329 = vset.pattern.permute.xlu0 4
    %330 = vperm.xlu0 %329, %v27
    %v331 = vpop.permute.xlu0 %330
    %333 = vset.pattern.permute.xlu0 4
    %334 = vperm.xlu0 %333, %v28
    %v335 = vpop.permute.xlu0 %334
    %337 = vset.pattern.permute.xlu0 4
    %338 = vperm.xlu0 %337, %v29
    %v339 = vpop.permute.xlu0 %338
    %341 = vset.pattern.permute.xlu0 4
    %342 = vperm.xlu0 %341, %v30
    %v343 = vpop.permute.xlu0 %342
    %345 = vset.pattern.permute.xlu0 4
    %346 = vperm.xlu0 %345, %v31
    %v347 = vpop.permute.xlu0 %346
    %349 = vset.pattern.permute.xlu0 4
    %350 = vperm.xlu0 %349, %v32
    %v351 = vpop.permute.xlu0 %350
    %353 = vset.pattern.permute.xlu0 4
    %354 = vperm.xlu0 %353, %v33
    %v355 = vpop.permute.xlu0 %354
    %357 = vset.pattern.permute.xlu0 4
    %358 = vperm.xlu0 %357, %v34
    %v359 = vpop.permute.xlu0 %358
    %361 = vset.pattern.permute.xlu0 4
    %362 = vperm.xlu0 %361, %v35
    %v363 = vpop.permute.xlu0 %362
    %365 = vset.pattern.permute.xlu0 4
    %366 = vperm.xlu0 %365, %v36
    %v367 = vpop.permute.xlu0 %366
    %369 = vset.pattern.permute.xlu0 4
    %370 = vperm.xlu0 %369, %v37
    %v371 = vpop.permute.xlu0 %370
    %373 = vset.pattern.permute.xlu0 4
    %374 = vperm.xlu0 %373, %v38
    %v375 = vpop.permute.xlu0 %374
    %v377 = vmul.f32 %v327, %v25
    %v378 = vmul.f32 %v331, %v25
    %v379 = vmul.f32 %v335, %v25
    %v380 = vmul.f32 %v339, %v25
    %v381 = vmul.f32 %v343, %v25
    %v382 = vmul.f32 %v347, %v25
    %v383 = vmul.f32 %v351, %v25
    %v384 = vmul.f32 %v355, %v25
    %v385 = vmul.f32 %v359, %v25
    %v386 = vmul.f32 %v363, %v25
    %v387 = vmul.f32 %v367, %v25
    %v388 = vmul.f32 %v371, %v25
    %v389 = vmul.f32 %v375, %v25
    %v390 = vadd.f32 %v312, %v377
    %v391 = vadd.f32 %v313, %v378
    %v392 = vadd.f32 %v314, %v379
    %v393 = vadd.f32 %v315, %v380
    %v394 = vadd.f32 %v316, %v381
    %v395 = vadd.f32 %v317, %v382
    %v396 = vadd.f32 %v318, %v383
    %v397 = vadd.f32 %v319, %v384
    %v398 = vadd.f32 %v320, %v385
    %v399 = vadd.f32 %v321, %v386
    %v400 = vadd.f32 %v322, %v387
    %v401 = vadd.f32 %v323, %v388
    %v402 = vadd.f32 %v324, %v389
    %403 = vset.pattern.permute.xlu0 5
    %404 = vperm.xlu0 %403, %v26
    %v405 = vpop.permute.xlu0 %404
    %407 = vset.pattern.permute.xlu0 5
    %408 = vperm.xlu0 %407, %v27
    %v409 = vpop.permute.xlu0 %408
    %411 = vset.pattern.permute.xlu0 5
    %412 = vperm.xlu0 %411, %v28
    %v413 = vpop.permute.xlu0 %412
    %415 = vset.pattern.permute.xlu0 5
    %416 = vperm.xlu0 %415, %v29
    %v417 = vpop.permute.xlu0 %416
    %419 = vset.pattern.permute.xlu0 5
    %420 = vperm.xlu0 %419, %v30
    %v421 = vpop.permute.xlu0 %420
    %423 = vset.pattern.permute.xlu0 5
    %424 = vperm.xlu0 %423, %v31
    %v425 = vpop.permute.xlu0 %424
    %427 = vset.pattern.permute.xlu0 5
    %428 = vperm.xlu0 %427, %v32
    %v429 = vpop.permute.xlu0 %428
    %431 = vset.pattern.permute.xlu0 5
    %432 = vperm.xlu0 %431, %v33
    %v433 = vpop.permute.xlu0 %432
    %435 = vset.pattern.permute.xlu0 5
    %436 = vperm.xlu0 %435, %v34
    %v437 = vpop.permute.xlu0 %436
    %439 = vset.pattern.permute.xlu0 5
    %440 = vperm.xlu0 %439, %v35
    %v441 = vpop.permute.xlu0 %440
    %443 = vset.pattern.permute.xlu0 5
    %444 = vperm.xlu0 %443, %v36
    %v445 = vpop.permute.xlu0 %444
    %447 = vset.pattern.permute.xlu0 5
    %448 = vperm.xlu0 %447, %v37
    %v449 = vpop.permute.xlu0 %448
    %451 = vset.pattern.permute.xlu0 5
    %452 = vperm.xlu0 %451, %v38
    %v453 = vpop.permute.xlu0 %452
    %v455 = vadd.f32 %v390, %v405
    %v456 = vadd.f32 %v391, %v409
    %v457 = vadd.f32 %v392, %v413
    %v458 = vadd.f32 %v393, %v417
    %v459 = vadd.f32 %v394, %v421
    %v460 = vadd.f32 %v395, %v425
    %v461 = vadd.f32 %v396, %v429
    %v462 = vadd.f32 %v397, %v433
    %v463 = vadd.f32 %v398, %v437
    %v464 = vadd.f32 %v399, %v441
    %v465 = vadd.f32 %v400, %v445
    %v466 = vadd.f32 %v401, %v449
    %v467 = vadd.f32 %v402, %v453
    %v468 = vxor.u32 %v247, 2147483648
    %v469 = vxor.u32 %v248, 2147483648
    %v470 = vxor.u32 %v249, 2147483648
    %v471 = vxor.u32 %v250, 2147483648
    %v472 = vxor.u32 %v251, 2147483648
    %v473 = vxor.u32 %v252, 2147483648
    %v474 = vxor.u32 %v253, 2147483648
    %v475 = vxor.u32 %v254, 2147483648
    %v476 = vxor.u32 %v255, 2147483648
    %v477 = vxor.u32 %v256, 2147483648
    %v478 = vxor.u32 %v257, 2147483648
    %v479 = vxor.u32 %v258, 2147483648
    %v480 = vxor.u32 %v259, 2147483648
    %v481 = vmul.f32 %v468, 1.442695
    %v482 = vpow.pop %v481
    %v483 = vmul.f32 %v469, 1.442695
    %v484 = vpow.pop %v483
    %v485 = vmul.f32 %v470, 1.442695
    %v486 = vpow.pop %v485
    %v487 = vmul.f32 %v471, 1.442695
    %v488 = vpow.pop %v487
    %v489 = vmul.f32 %v472, 1.442695
    %v490 = vpow.pop %v489
    %v491 = vmul.f32 %v473, 1.442695
    %v492 = vpow.pop %v491
    %v493 = vmul.f32 %v474, 1.442695
    %v494 = vpow.pop %v493
    %v495 = vmul.f32 %v475, 1.442695
    %v496 = vpow.pop %v495
    %v497 = vmul.f32 %v476, 1.442695
    %v498 = vpow.pop %v497
    %v499 = vmul.f32 %v477, 1.442695
    %v500 = vpow.pop %v499
    %v501 = vmul.f32 %v478, 1.442695
    %v502 = vpow.pop %v501
    %v503 = vmul.f32 %v479, 1.442695
    %v504 = vpow.pop %v503
    %v505 = vmul.f32 %v480, 1.442695
    %v506 = vpow.pop %v505
    %v507 = vadd.f32 %v482, 1.0
    %v508 = vadd.f32 %v484, 1.0
    %v509 = vadd.f32 %v486, 1.0
    %v510 = vadd.f32 %v488, 1.0
    %v511 = vadd.f32 %v490, 1.0
    %v512 = vadd.f32 %v492, 1.0
    %v513 = vadd.f32 %v494, 1.0
    %v514 = vadd.f32 %v496, 1.0
    %v515 = vadd.f32 %v498, 1.0
    %v516 = vadd.f32 %v500, 1.0
    %v517 = vadd.f32 %v502, 1.0
    %v518 = vadd.f32 %v504, 1.0
    %v519 = vadd.f32 %v506, 1.0
    %v520 = vrcp.pop %v507
    %v521 = vmul.f32 1.0, %v520
    %v522 = vrcp.pop %v508
    %v523 = vmul.f32 1.0, %v522
    %v524 = vrcp.pop %v509
    %v525 = vmul.f32 1.0, %v524
    %v526 = vrcp.pop %v510
    %v527 = vmul.f32 1.0, %v526
    %v528 = vrcp.pop %v511
    %v529 = vmul.f32 1.0, %v528
    %v530 = vrcp.pop %v512
    %v531 = vmul.f32 1.0, %v530
    %v532 = vrcp.pop %v513
    %v533 = vmul.f32 1.0, %v532
    %v534 = vrcp.pop %v514
    %v535 = vmul.f32 1.0, %v534
    %v536 = vrcp.pop %v515
    %v537 = vmul.f32 1.0, %v536
    %v538 = vrcp.pop %v516
    %v539 = vmul.f32 1.0, %v538
    %v540 = vrcp.pop %v517
    %v541 = vmul.f32 1.0, %v540
    %v542 = vrcp.pop %v518
    %v543 = vmul.f32 1.0, %v542
    %v544 = vrcp.pop %v519
    %v545 = vmul.f32 1.0, %v544
    %v546 = vxor.u32 %v455, 2147483648
    %v547 = vxor.u32 %v456, 2147483648
    %v548 = vxor.u32 %v457, 2147483648
    %v549 = vxor.u32 %v458, 2147483648
    %v550 = vxor.u32 %v459, 2147483648
    %v551 = vxor.u32 %v460, 2147483648
    %v552 = vxor.u32 %v461, 2147483648
    %v553 = vxor.u32 %v462, 2147483648
    %v554 = vxor.u32 %v463, 2147483648
    %v555 = vxor.u32 %v464, 2147483648
    %v556 = vxor.u32 %v465, 2147483648
    %v557 = vxor.u32 %v466, 2147483648
    %v558 = vxor.u32 %v467, 2147483648
    %v559 = vmul.f32 %v546, 1.442695
    %v560 = vpow.pop %v559
    %v561 = vmul.f32 %v547, 1.442695
    %v562 = vpow.pop %v561
    %v563 = vmul.f32 %v548, 1.442695
    %v564 = vpow.pop %v563
    %v565 = vmul.f32 %v549, 1.442695
    %v566 = vpow.pop %v565
    %v567 = vmul.f32 %v550, 1.442695
    %v568 = vpow.pop %v567
    %v569 = vmul.f32 %v551, 1.442695
    %v570 = vpow.pop %v569
    %v571 = vmul.f32 %v552, 1.442695
    %v572 = vpow.pop %v571
    %v573 = vmul.f32 %v553, 1.442695
    %v574 = vpow.pop %v573
    %v575 = vmul.f32 %v554, 1.442695
    %v576 = vpow.pop %v575
    %v577 = vmul.f32 %v555, 1.442695
    %v578 = vpow.pop %v577
    %v579 = vmul.f32 %v556, 1.442695
    %v580 = vpow.pop %v579
    %v581 = vmul.f32 %v557, 1.442695
    %v582 = vpow.pop %v581
    %v583 = vmul.f32 %v558, 1.442695
    %v584 = vpow.pop %v583
    %v585 = vadd.f32 %v560, 1.0
    %v586 = vadd.f32 %v562, 1.0
    %v587 = vadd.f32 %v564, 1.0
    %v588 = vadd.f32 %v566, 1.0
    %v589 = vadd.f32 %v568, 1.0
    %v590 = vadd.f32 %v570, 1.0
    %v591 = vadd.f32 %v572, 1.0
    %v592 = vadd.f32 %v574, 1.0
    %v593 = vadd.f32 %v576, 1.0
    %v594 = vadd.f32 %v578, 1.0
    %v595 = vadd.f32 %v580, 1.0
    %v596 = vadd.f32 %v582, 1.0
    %v597 = vadd.f32 %v584, 1.0
    %v598 = vrcp.pop %v585
    %v599 = vmul.f32 1.0, %v598
    %v600 = vrcp.pop %v586
    %v601 = vmul.f32 1.0, %v600
    %v602 = vrcp.pop %v587
    %v603 = vmul.f32 1.0, %v602
    %v604 = vrcp.pop %v588
    %v605 = vmul.f32 1.0, %v604
    %v606 = vrcp.pop %v589
    %v607 = vmul.f32 1.0, %v606
    %v608 = vrcp.pop %v590
    %v609 = vmul.f32 1.0, %v608
    %v610 = vrcp.pop %v591
    %v611 = vmul.f32 1.0, %v610
    %v612 = vrcp.pop %v592
    %v613 = vmul.f32 1.0, %v612
    %v614 = vrcp.pop %v593
    %v615 = vmul.f32 1.0, %v614
    %v616 = vrcp.pop %v594
    %v617 = vmul.f32 1.0, %v616
    %v618 = vrcp.pop %v595
    %v619 = vmul.f32 1.0, %v618
    %v620 = vrcp.pop %v596
    %v621 = vmul.f32 1.0, %v620
    %v622 = vrcp.pop %v597
    %v623 = vmul.f32 1.0, %v622
    %v624 = vmul.f32 %v521, %v521
    %v625 = vmul.f32 %v523, %v523
    %v626 = vmul.f32 %v525, %v525
    %v627 = vmul.f32 %v527, %v527
    %v628 = vmul.f32 %v529, %v529
    %v629 = vmul.f32 %v531, %v531
    %v630 = vmul.f32 %v533, %v533
    %v631 = vmul.f32 %v535, %v535
    %v632 = vmul.f32 %v537, %v537
    %v633 = vmul.f32 %v539, %v539
    %v634 = vmul.f32 %v541, %v541
    %v635 = vmul.f32 %v543, %v543
    %v636 = vmul.f32 %v545, %v545
    %v637 = vsub.f32 %v521, %v624
    %v638 = vsub.f32 %v523, %v625
    %v639 = vsub.f32 %v525, %v626
    %v640 = vsub.f32 %v527, %v627
    %v641 = vsub.f32 %v529, %v628
    %v642 = vsub.f32 %v531, %v629
    %v643 = vsub.f32 %v533, %v630
    %v644 = vsub.f32 %v535, %v631
    %v645 = vsub.f32 %v537, %v632
    %v646 = vsub.f32 %v539, %v633
    %v647 = vsub.f32 %v541, %v634
    %v648 = vsub.f32 %v543, %v635
    %v649 = vsub.f32 %v545, %v636
    %v650 = vmul.f32 %v599, %v599
    %v651 = vmul.f32 %v601, %v601
    %v652 = vmul.f32 %v603, %v603
    %v653 = vmul.f32 %v605, %v605
    %v654 = vmul.f32 %v607, %v607
    %v655 = vmul.f32 %v609, %v609
    %v656 = vmul.f32 %v611, %v611
    %v657 = vmul.f32 %v613, %v613
    %v658 = vmul.f32 %v615, %v615
    %v659 = vmul.f32 %v617, %v617
    %v660 = vmul.f32 %v619, %v619
    %v661 = vmul.f32 %v621, %v621
    %v662 = vmul.f32 %v623, %v623
    %v663 = vsub.f32 %v599, %v650
    %v664 = vsub.f32 %v601, %v651
    %v665 = vsub.f32 %v603, %v652
    %v666 = vsub.f32 %v605, %v653
    %v667 = vsub.f32 %v607, %v654
    %v668 = vsub.f32 %v609, %v655
    %v669 = vsub.f32 %v611, %v656
    %v670 = vsub.f32 %v613, %v657
    %v671 = vsub.f32 %v615, %v658
    %v672 = vsub.f32 %v617, %v659
    %v673 = vsub.f32 %v619, %v660
    %v674 = vsub.f32 %v621, %v661
    %v675 = vsub.f32 %v623, %v662
    %v676 = vmul.f32 %v637, %v599
    %v677 = vmul.f32 %v638, %v601
    %v678 = vmul.f32 %v639, %v603
    %v679 = vmul.f32 %v640, %v605
    %v680 = vmul.f32 %v641, %v607
    %v681 = vmul.f32 %v642, %v609
    %v682 = vmul.f32 %v643, %v611
    %v683 = vmul.f32 %v644, %v613
    %v684 = vmul.f32 %v645, %v615
    %v685 = vmul.f32 %v646, %v617
    %v686 = vmul.f32 %v647, %v619
    %v687 = vmul.f32 %v648, %v621
    %v688 = vmul.f32 %v649, %v623
    %v689 = vmul.f32 %v521, %v663
    %v690 = vmul.f32 %v523, %v664
    %v691 = vmul.f32 %v525, %v665
    %v692 = vmul.f32 %v527, %v666
    %v693 = vmul.f32 %v529, %v667
    %v694 = vmul.f32 %v531, %v668
    %v695 = vmul.f32 %v533, %v669
    %v696 = vmul.f32 %v535, %v670
    %v697 = vmul.f32 %v537, %v671
    %v698 = vmul.f32 %v539, %v672
    %v699 = vmul.f32 %v541, %v673
    %v700 = vmul.f32 %v543, %v674
    %v701 = vmul.f32 %v545, %v675
    %v702 = vmul.f32 %v676, %v521
    %v703 = vmul.f32 %v677, %v523
    %v704 = vmul.f32 %v678, %v525
    %v705 = vmul.f32 %v679, %v527
    %v706 = vmul.f32 %v680, %v529
    %v707 = vmul.f32 %v681, %v531
    %v708 = vmul.f32 %v682, %v533
    %v709 = vmul.f32 %v683, %v535
    %v710 = vmul.f32 %v684, %v537
    %v711 = vmul.f32 %v685, %v539
    %v712 = vmul.f32 %v686, %v541
    %v713 = vmul.f32 %v687, %v543
    %v714 = vmul.f32 %v688, %v545
    %v715 = vmul.f32 %v702, 2.0
    %v716 = vmul.f32 %v703, 2.0
    %v717 = vmul.f32 %v704, 2.0
    %v718 = vmul.f32 %v705, 2.0
    %v719 = vmul.f32 %v706, 2.0
    %v720 = vmul.f32 %v707, 2.0
    %v721 = vmul.f32 %v708, 2.0
    %v722 = vmul.f32 %v709, 2.0
    %v723 = vmul.f32 %v710, 2.0
    %v724 = vmul.f32 %v711, 2.0
    %v725 = vmul.f32 %v712, 2.0
    %v726 = vmul.f32 %v713, 2.0
    %v727 = vmul.f32 %v714, 2.0
    %v728 = vsub.f32 %v676, %v715
    %v729 = vsub.f32 %v677, %v716
    %v730 = vsub.f32 %v678, %v717
    %v731 = vsub.f32 %v679, %v718
    %v732 = vsub.f32 %v680, %v719
    %v733 = vsub.f32 %v681, %v720
    %v734 = vsub.f32 %v682, %v721
    %v735 = vsub.f32 %v683, %v722
    %v736 = vsub.f32 %v684, %v723
    %v737 = vsub.f32 %v685, %v724
    %v738 = vsub.f32 %v686, %v725
    %v739 = vsub.f32 %v687, %v726
    %v740 = vsub.f32 %v688, %v727
    %v741 = vmul.f32 %v689, %v599
    %v742 = vmul.f32 %v690, %v601
    %v743 = vmul.f32 %v691, %v603
    %v744 = vmul.f32 %v692, %v605
    %v745 = vmul.f32 %v693, %v607
    %v746 = vmul.f32 %v694, %v609
    %v747 = vmul.f32 %v695, %v611
    %v748 = vmul.f32 %v696, %v613
    %v749 = vmul.f32 %v697, %v615
    %v750 = vmul.f32 %v698, %v617
    %v751 = vmul.f32 %v699, %v619
    %v752 = vmul.f32 %v700, %v621
    %v753 = vmul.f32 %v701, %v623
    %v754 = vmul.f32 %v741, 2.0
    %v755 = vmul.f32 %v742, 2.0
    %v756 = vmul.f32 %v743, 2.0
    %v757 = vmul.f32 %v744, 2.0
    %v758 = vmul.f32 %v745, 2.0
    %v759 = vmul.f32 %v746, 2.0
    %v760 = vmul.f32 %v747, 2.0
    %v761 = vmul.f32 %v748, 2.0
    %v762 = vmul.f32 %v749, 2.0
    %v763 = vmul.f32 %v750, 2.0
    %v764 = vmul.f32 %v751, 2.0
    %v765 = vmul.f32 %v752, 2.0
    %v766 = vmul.f32 %v753, 2.0
    %v767 = vsub.f32 %v689, %v754
    %v768 = vsub.f32 %v690, %v755
    %v769 = vsub.f32 %v691, %v756
    %v770 = vsub.f32 %v692, %v757
    %v771 = vsub.f32 %v693, %v758
    %v772 = vsub.f32 %v694, %v759
    %v773 = vsub.f32 %v695, %v760
    %v774 = vsub.f32 %v696, %v761
    %v775 = vsub.f32 %v697, %v762
    %v776 = vsub.f32 %v698, %v763
    %v777 = vsub.f32 %v699, %v764
    %v778 = vsub.f32 %v700, %v765
    %v779 = vsub.f32 %v701, %v766
    %v780 = vmul.f32 %v637, %v663
    %v781 = vmul.f32 %v638, %v664
    %v782 = vmul.f32 %v639, %v665
    %v783 = vmul.f32 %v640, %v666
    %v784 = vmul.f32 %v641, %v667
    %v785 = vmul.f32 %v642, %v668
    %v786 = vmul.f32 %v643, %v669
    %v787 = vmul.f32 %v644, %v670
    %v788 = vmul.f32 %v645, %v671
    %v789 = vmul.f32 %v646, %v672
    %v790 = vmul.f32 %v647, %v673
    %v791 = vmul.f32 %v648, %v674
    %v792 = vmul.f32 %v649, %v675
    %v793 = vmul.f32 %v521, %v599
    %v794 = vmul.f32 %v523, %v601
    %v795 = vmul.f32 %v525, %v603
    %v796 = vmul.f32 %v527, %v605
    %v797 = vmul.f32 %v529, %v607
    %v798 = vmul.f32 %v531, %v609
    %v799 = vmul.f32 %v533, %v611
    %v800 = vmul.f32 %v535, %v613
    %v801 = vmul.f32 %v537, %v615
    %v802 = vmul.f32 %v539, %v617
    %v803 = vmul.f32 %v541, %v619
    %v804 = vmul.f32 %v543, %v621
    %v805 = vmul.f32 %v545, %v623
    %806 = vset.pattern.permute.xlu0 6
    %807 = vperm.xlu0 %806, %v26
    %v808 = vpop.permute.xlu0 %807
    %810 = vset.pattern.permute.xlu0 6
    %811 = vperm.xlu0 %810, %v27
    %v812 = vpop.permute.xlu0 %811
    %814 = vset.pattern.permute.xlu0 6
    %815 = vperm.xlu0 %814, %v28
    %v816 = vpop.permute.xlu0 %815
    %818 = vset.pattern.permute.xlu0 6
    %819 = vperm.xlu0 %818, %v29
    %v820 = vpop.permute.xlu0 %819
    %822 = vset.pattern.permute.xlu0 6
    %823 = vperm.xlu0 %822, %v30
    %v824 = vpop.permute.xlu0 %823
    %826 = vset.pattern.permute.xlu0 6
    %827 = vperm.xlu0 %826, %v31
    %v828 = vpop.permute.xlu0 %827
    %830 = vset.pattern.permute.xlu0 6
    %831 = vperm.xlu0 %830, %v32
    %v832 = vpop.permute.xlu0 %831
    %834 = vset.pattern.permute.xlu0 6
    %835 = vperm.xlu0 %834, %v33
    %v836 = vpop.permute.xlu0 %835
    %838 = vset.pattern.permute.xlu0 6
    %839 = vperm.xlu0 %838, %v34
    %v840 = vpop.permute.xlu0 %839
    %842 = vset.pattern.permute.xlu0 6
    %843 = vperm.xlu0 %842, %v35
    %v844 = vpop.permute.xlu0 %843
    %846 = vset.pattern.permute.xlu0 6
    %847 = vperm.xlu0 %846, %v36
    %v848 = vpop.permute.xlu0 %847
    %850 = vset.pattern.permute.xlu0 6
    %851 = vperm.xlu0 %850, %v37
    %v852 = vpop.permute.xlu0 %851
    %854 = vset.pattern.permute.xlu0 6
    %855 = vperm.xlu0 %854, %v38
    %v856 = vpop.permute.xlu0 %855
    %v858 = vmul.f32 %v793, %v808
    %v859 = vmul.f32 %v794, %v812
    %v860 = vmul.f32 %v795, %v816
    %v861 = vmul.f32 %v796, %v820
    %v862 = vmul.f32 %v797, %v824
    %v863 = vmul.f32 %v798, %v828
    %v864 = vmul.f32 %v799, %v832
    %v865 = vmul.f32 %v800, %v836
    %v866 = vmul.f32 %v801, %v840
    %v867 = vmul.f32 %v802, %v844
    %v868 = vmul.f32 %v803, %v848
    %v869 = vmul.f32 %v804, %v852
    %v870 = vmul.f32 %v805, %v856
    %871 = vset.pattern.permute.xlu0 8
    %872 = vperm.xlu0 %871, %v26
    %v873 = vpop.permute.xlu0 %872
    %875 = vset.pattern.permute.xlu0 8
    %876 = vperm.xlu0 %875, %v27
    %v877 = vpop.permute.xlu0 %876
    %879 = vset.pattern.permute.xlu0 8
    %880 = vperm.xlu0 %879, %v28
    %v881 = vpop.permute.xlu0 %880
    %883 = vset.pattern.permute.xlu0 8
    %884 = vperm.xlu0 %883, %v29
    %v885 = vpop.permute.xlu0 %884
    %887 = vset.pattern.permute.xlu0 8
    %888 = vperm.xlu0 %887, %v30
    %v889 = vpop.permute.xlu0 %888
    %891 = vset.pattern.permute.xlu0 8
    %892 = vperm.xlu0 %891, %v31
    %v893 = vpop.permute.xlu0 %892
    %895 = vset.pattern.permute.xlu0 8
    %896 = vperm.xlu0 %895, %v32
    %v897 = vpop.permute.xlu0 %896
    %899 = vset.pattern.permute.xlu0 8
    %900 = vperm.xlu0 %899, %v33
    %v901 = vpop.permute.xlu0 %900
    %903 = vset.pattern.permute.xlu0 8
    %904 = vperm.xlu0 %903, %v34
    %v905 = vpop.permute.xlu0 %904
    %907 = vset.pattern.permute.xlu0 8
    %908 = vperm.xlu0 %907, %v35
    %v909 = vpop.permute.xlu0 %908
    %911 = vset.pattern.permute.xlu0 8
    %912 = vperm.xlu0 %911, %v36
    %v913 = vpop.permute.xlu0 %912
    %915 = vset.pattern.permute.xlu0 8
    %916 = vperm.xlu0 %915, %v37
    %v917 = vpop.permute.xlu0 %916
    %919 = vset.pattern.permute.xlu0 8
    %920 = vperm.xlu0 %919, %v38
    %v921 = vpop.permute.xlu0 %920
    %v923 = vmul.f32 %v676, %v873
    %v924 = vmul.f32 %v677, %v877
    %v925 = vmul.f32 %v678, %v881
    %v926 = vmul.f32 %v679, %v885
    %v927 = vmul.f32 %v680, %v889
    %v928 = vmul.f32 %v681, %v893
    %v929 = vmul.f32 %v682, %v897
    %v930 = vmul.f32 %v683, %v901
    %v931 = vmul.f32 %v684, %v905
    %v932 = vmul.f32 %v685, %v909
    %v933 = vmul.f32 %v686, %v913
    %v934 = vmul.f32 %v687, %v917
    %v935 = vmul.f32 %v688, %v921
    %936 = vset.pattern.permute.xlu0 10
    %937 = vperm.xlu0 %936, %v26
    %v938 = vpop.permute.xlu0 %937
    %940 = vset.pattern.permute.xlu0 10
    %941 = vperm.xlu0 %940, %v27
    %v942 = vpop.permute.xlu0 %941
    %944 = vset.pattern.permute.xlu0 10
    %945 = vperm.xlu0 %944, %v28
    %v946 = vpop.permute.xlu0 %945
    %948 = vset.pattern.permute.xlu0 10
    %949 = vperm.xlu0 %948, %v29
    %v950 = vpop.permute.xlu0 %949
    %952 = vset.pattern.permute.xlu0 10
    %953 = vperm.xlu0 %952, %v30
    %v954 = vpop.permute.xlu0 %953
    %956 = vset.pattern.permute.xlu0 10
    %957 = vperm.xlu0 %956, %v31
    %v958 = vpop.permute.xlu0 %957
    %960 = vset.pattern.permute.xlu0 10
    %961 = vperm.xlu0 %960, %v32
    %v962 = vpop.permute.xlu0 %961
    %964 = vset.pattern.permute.xlu0 10
    %965 = vperm.xlu0 %964, %v33
    %v966 = vpop.permute.xlu0 %965
    %968 = vset.pattern.permute.xlu0 10
    %969 = vperm.xlu0 %968, %v34
    %v970 = vpop.permute.xlu0 %969
    %972 = vset.pattern.permute.xlu0 10
    %973 = vperm.xlu0 %972, %v35
    %v974 = vpop.permute.xlu0 %973
    %976 = vset.pattern.permute.xlu0 10
    %977 = vperm.xlu0 %976, %v36
    %v978 = vpop.permute.xlu0 %977
    %980 = vset.pattern.permute.xlu0 10
    %981 = vperm.xlu0 %980, %v37
    %v982 = vpop.permute.xlu0 %981
    %984 = vset.pattern.permute.xlu0 10
    %985 = vperm.xlu0 %984, %v38
    %v986 = vpop.permute.xlu0 %985
    %v988 = vmul.f32 %v689, %v938
    %v989 = vmul.f32 %v690, %v942
    %v990 = vmul.f32 %v691, %v946
    %v991 = vmul.f32 %v692, %v950
    %v992 = vmul.f32 %v693, %v954
    %v993 = vmul.f32 %v694, %v958
    %v994 = vmul.f32 %v695, %v962
    %v995 = vmul.f32 %v696, %v966
    %v996 = vmul.f32 %v697, %v970
    %v997 = vmul.f32 %v698, %v974
    %v998 = vmul.f32 %v699, %v978
    %v999 = vmul.f32 %v700, %v982
    %v1000 = vmul.f32 %v701, %v986
    %v1001 = vadd.f32 %v923, %v988
    %v1002 = vadd.f32 %v924, %v989
    %v1003 = vadd.f32 %v925, %v990
    %v1004 = vadd.f32 %v926, %v991
    %v1005 = vadd.f32 %v927, %v992
    %v1006 = vadd.f32 %v928, %v993
    %v1007 = vadd.f32 %v929, %v994
    %v1008 = vadd.f32 %v930, %v995
    %v1009 = vadd.f32 %v931, %v996
    %v1010 = vadd.f32 %v932, %v997
    %v1011 = vadd.f32 %v933, %v998
    %v1012 = vadd.f32 %v934, %v999
    %v1013 = vadd.f32 %v935, %v1000
    %1014 = vset.pattern.permute.xlu0 7
    %1015 = vperm.xlu0 %1014, %v26
    %v1016 = vpop.permute.xlu0 %1015
    %1018 = vset.pattern.permute.xlu0 7
    %1019 = vperm.xlu0 %1018, %v27
    %v1020 = vpop.permute.xlu0 %1019
    %1022 = vset.pattern.permute.xlu0 7
    %1023 = vperm.xlu0 %1022, %v28
    %v1024 = vpop.permute.xlu0 %1023
    %1026 = vset.pattern.permute.xlu0 7
    %1027 = vperm.xlu0 %1026, %v29
    %v1028 = vpop.permute.xlu0 %1027
    %1030 = vset.pattern.permute.xlu0 7
    %1031 = vperm.xlu0 %1030, %v30
    %v1032 = vpop.permute.xlu0 %1031
    %1034 = vset.pattern.permute.xlu0 7
    %1035 = vperm.xlu0 %1034, %v31
    %v1036 = vpop.permute.xlu0 %1035
    %1038 = vset.pattern.permute.xlu0 7
    %1039 = vperm.xlu0 %1038, %v32
    %v1040 = vpop.permute.xlu0 %1039
    %1042 = vset.pattern.permute.xlu0 7
    %1043 = vperm.xlu0 %1042, %v33
    %v1044 = vpop.permute.xlu0 %1043
    %1046 = vset.pattern.permute.xlu0 7
    %1047 = vperm.xlu0 %1046, %v34
    %v1048 = vpop.permute.xlu0 %1047
    %1050 = vset.pattern.permute.xlu0 7
    %1051 = vperm.xlu0 %1050, %v35
    %v1052 = vpop.permute.xlu0 %1051
    %1054 = vset.pattern.permute.xlu0 7
    %1055 = vperm.xlu0 %1054, %v36
    %v1056 = vpop.permute.xlu0 %1055
    %1058 = vset.pattern.permute.xlu0 7
    %1059 = vperm.xlu0 %1058, %v37
    %v1060 = vpop.permute.xlu0 %1059
    %1062 = vset.pattern.permute.xlu0 7
    %1063 = vperm.xlu0 %1062, %v38
    %v1064 = vpop.permute.xlu0 %1063
    %v1066 = vmul.f32 %v676, %v1016
    %v1067 = vmul.f32 %v677, %v1020
    %v1068 = vmul.f32 %v678, %v1024
    %v1069 = vmul.f32 %v679, %v1028
    %v1070 = vmul.f32 %v680, %v1032
    %v1071 = vmul.f32 %v681, %v1036
    %v1072 = vmul.f32 %v682, %v1040
    %v1073 = vmul.f32 %v683, %v1044
    %v1074 = vmul.f32 %v684, %v1048
    %v1075 = vmul.f32 %v685, %v1052
    %v1076 = vmul.f32 %v686, %v1056
    %v1077 = vmul.f32 %v687, %v1060
    %v1078 = vmul.f32 %v688, %v1064
    %1079 = vset.pattern.permute.xlu0 9
    %1080 = vperm.xlu0 %1079, %v26
    %v1081 = vpop.permute.xlu0 %1080
    %1083 = vset.pattern.permute.xlu0 9
    %1084 = vperm.xlu0 %1083, %v27
    %v1085 = vpop.permute.xlu0 %1084
    %1087 = vset.pattern.permute.xlu0 9
    %1088 = vperm.xlu0 %1087, %v28
    %v1089 = vpop.permute.xlu0 %1088
    %1091 = vset.pattern.permute.xlu0 9
    %1092 = vperm.xlu0 %1091, %v29
    %v1093 = vpop.permute.xlu0 %1092
    %1095 = vset.pattern.permute.xlu0 9
    %1096 = vperm.xlu0 %1095, %v30
    %v1097 = vpop.permute.xlu0 %1096
    %1099 = vset.pattern.permute.xlu0 9
    %1100 = vperm.xlu0 %1099, %v31
    %v1101 = vpop.permute.xlu0 %1100
    %1103 = vset.pattern.permute.xlu0 9
    %1104 = vperm.xlu0 %1103, %v32
    %v1105 = vpop.permute.xlu0 %1104
    %1107 = vset.pattern.permute.xlu0 9
    %1108 = vperm.xlu0 %1107, %v33
    %v1109 = vpop.permute.xlu0 %1108
    %1111 = vset.pattern.permute.xlu0 9
    %1112 = vperm.xlu0 %1111, %v34
    %v1113 = vpop.permute.xlu0 %1112
    %1115 = vset.pattern.permute.xlu0 9
    %1116 = vperm.xlu0 %1115, %v35
    %v1117 = vpop.permute.xlu0 %1116
    %1119 = vset.pattern.permute.xlu0 9
    %1120 = vperm.xlu0 %1119, %v36
    %v1121 = vpop.permute.xlu0 %1120
    %1123 = vset.pattern.permute.xlu0 9
    %1124 = vperm.xlu0 %1123, %v37
    %v1125 = vpop.permute.xlu0 %1124
    %1127 = vset.pattern.permute.xlu0 9
    %1128 = vperm.xlu0 %1127, %v38
    %v1129 = vpop.permute.xlu0 %1128
    %v1131 = vmul.f32 %v689, %v1081
    %v1132 = vmul.f32 %v690, %v1085
    %v1133 = vmul.f32 %v691, %v1089
    %v1134 = vmul.f32 %v692, %v1093
    %v1135 = vmul.f32 %v693, %v1097
    %v1136 = vmul.f32 %v694, %v1101
    %v1137 = vmul.f32 %v695, %v1105
    %v1138 = vmul.f32 %v696, %v1109
    %v1139 = vmul.f32 %v697, %v1113
    %v1140 = vmul.f32 %v698, %v1117
    %v1141 = vmul.f32 %v699, %v1121
    %v1142 = vmul.f32 %v700, %v1125
    %v1143 = vmul.f32 %v701, %v1129
    %v1144 = vadd.f32 %v1066, %v1131
    %v1145 = vadd.f32 %v1067, %v1132
    %v1146 = vadd.f32 %v1068, %v1133
    %v1147 = vadd.f32 %v1069, %v1134
    %v1148 = vadd.f32 %v1070, %v1135
    %v1149 = vadd.f32 %v1071, %v1136
    %v1150 = vadd.f32 %v1072, %v1137
    %v1151 = vadd.f32 %v1073, %v1138
    %v1152 = vadd.f32 %v1074, %v1139
    %v1153 = vadd.f32 %v1075, %v1140
    %v1154 = vadd.f32 %v1076, %v1141
    %v1155 = vadd.f32 %v1077, %v1142
    %v1156 = vadd.f32 %v1078, %v1143
    %1157 = vset.pattern.permute.xlu0 11
    %1158 = vperm.xlu0 %1157, %v26
    %v1159 = vpop.permute.xlu0 %1158
    %1161 = vset.pattern.permute.xlu0 11
    %1162 = vperm.xlu0 %1161, %v27
    %v1163 = vpop.permute.xlu0 %1162
    %1165 = vset.pattern.permute.xlu0 11
    %1166 = vperm.xlu0 %1165, %v28
    %v1167 = vpop.permute.xlu0 %1166
    %1169 = vset.pattern.permute.xlu0 11
    %1170 = vperm.xlu0 %1169, %v29
    %v1171 = vpop.permute.xlu0 %1170
    %1173 = vset.pattern.permute.xlu0 11
    %1174 = vperm.xlu0 %1173, %v30
    %v1175 = vpop.permute.xlu0 %1174
    %1177 = vset.pattern.permute.xlu0 11
    %1178 = vperm.xlu0 %1177, %v31
    %v1179 = vpop.permute.xlu0 %1178
    %1181 = vset.pattern.permute.xlu0 11
    %1182 = vperm.xlu0 %1181, %v32
    %v1183 = vpop.permute.xlu0 %1182
    %1185 = vset.pattern.permute.xlu0 11
    %1186 = vperm.xlu0 %1185, %v33
    %v1187 = vpop.permute.xlu0 %1186
    %1189 = vset.pattern.permute.xlu0 11
    %1190 = vperm.xlu0 %1189, %v34
    %v1191 = vpop.permute.xlu0 %1190
    %1193 = vset.pattern.permute.xlu0 11
    %1194 = vperm.xlu0 %1193, %v35
    %v1195 = vpop.permute.xlu0 %1194
    %1197 = vset.pattern.permute.xlu0 11
    %1198 = vperm.xlu0 %1197, %v36
    %v1199 = vpop.permute.xlu0 %1198
    %1201 = vset.pattern.permute.xlu0 11
    %1202 = vperm.xlu0 %1201, %v37
    %v1203 = vpop.permute.xlu0 %1202
    %1205 = vset.pattern.permute.xlu0 11
    %1206 = vperm.xlu0 %1205, %v38
    %v1207 = vpop.permute.xlu0 %1206
    %v1209 = vmul.f32 %v728, %v1159
    %v1210 = vmul.f32 %v729, %v1163
    %v1211 = vmul.f32 %v730, %v1167
    %v1212 = vmul.f32 %v731, %v1171
    %v1213 = vmul.f32 %v732, %v1175
    %v1214 = vmul.f32 %v733, %v1179
    %v1215 = vmul.f32 %v734, %v1183
    %v1216 = vmul.f32 %v735, %v1187
    %v1217 = vmul.f32 %v736, %v1191
    %v1218 = vmul.f32 %v737, %v1195
    %v1219 = vmul.f32 %v738, %v1199
    %v1220 = vmul.f32 %v739, %v1203
    %v1221 = vmul.f32 %v740, %v1207
    %v1222 = vadd.f32 %v1144, %v1209
    %v1223 = vadd.f32 %v1145, %v1210
    %v1224 = vadd.f32 %v1146, %v1211
    %v1225 = vadd.f32 %v1147, %v1212
    %v1226 = vadd.f32 %v1148, %v1213
    %v1227 = vadd.f32 %v1149, %v1214
    %v1228 = vadd.f32 %v1150, %v1215
    %v1229 = vadd.f32 %v1151, %v1216
    %v1230 = vadd.f32 %v1152, %v1217
    %v1231 = vadd.f32 %v1153, %v1218
    %v1232 = vadd.f32 %v1154, %v1219
    %v1233 = vadd.f32 %v1155, %v1220
    %v1234 = vadd.f32 %v1156, %v1221
    %1235 = vset.pattern.permute.xlu0 12
    %1236 = vperm.xlu0 %1235, %v26
    %v1237 = vpop.permute.xlu0 %1236
    %1239 = vset.pattern.permute.xlu0 12
    %1240 = vperm.xlu0 %1239, %v27
    %v1241 = vpop.permute.xlu0 %1240
    %1243 = vset.pattern.permute.xlu0 12
    %1244 = vperm.xlu0 %1243, %v28
    %v1245 = vpop.permute.xlu0 %1244
    %1247 = vset.pattern.permute.xlu0 12
    %1248 = vperm.xlu0 %1247, %v29
    %v1249 = vpop.permute.xlu0 %1248
    %1251 = vset.pattern.permute.xlu0 12
    %1252 = vperm.xlu0 %1251, %v30
    %v1253 = vpop.permute.xlu0 %1252
    %1255 = vset.pattern.permute.xlu0 12
    %1256 = vperm.xlu0 %1255, %v31
    %v1257 = vpop.permute.xlu0 %1256
    %1259 = vset.pattern.permute.xlu0 12
    %1260 = vperm.xlu0 %1259, %v32
    %v1261 = vpop.permute.xlu0 %1260
    %1263 = vset.pattern.permute.xlu0 12
    %1264 = vperm.xlu0 %1263, %v33
    %v1265 = vpop.permute.xlu0 %1264
    %1267 = vset.pattern.permute.xlu0 12
    %1268 = vperm.xlu0 %1267, %v34
    %v1269 = vpop.permute.xlu0 %1268
    %1271 = vset.pattern.permute.xlu0 12
    %1272 = vperm.xlu0 %1271, %v35
    %v1273 = vpop.permute.xlu0 %1272
    %1275 = vset.pattern.permute.xlu0 12
    %1276 = vperm.xlu0 %1275, %v36
    %v1277 = vpop.permute.xlu0 %1276
    %1279 = vset.pattern.permute.xlu0 12
    %1280 = vperm.xlu0 %1279, %v37
    %v1281 = vpop.permute.xlu0 %1280
    %1283 = vset.pattern.permute.xlu0 12
    %1284 = vperm.xlu0 %1283, %v38
    %v1285 = vpop.permute.xlu0 %1284
    %v1287 = vmul.f32 %v780, %v1237
    %v1288 = vmul.f32 %v781, %v1241
    %v1289 = vmul.f32 %v782, %v1245
    %v1290 = vmul.f32 %v783, %v1249
    %v1291 = vmul.f32 %v784, %v1253
    %v1292 = vmul.f32 %v785, %v1257
    %v1293 = vmul.f32 %v786, %v1261
    %v1294 = vmul.f32 %v787, %v1265
    %v1295 = vmul.f32 %v788, %v1269
    %v1296 = vmul.f32 %v789, %v1273
    %v1297 = vmul.f32 %v790, %v1277
    %v1298 = vmul.f32 %v791, %v1281
    %v1299 = vmul.f32 %v792, %v1285
    %v1300 = vadd.f32 %v1222, %v1287
    %v1301 = vadd.f32 %v1223, %v1288
    %v1302 = vadd.f32 %v1224, %v1289
    %v1303 = vadd.f32 %v1225, %v1290
    %v1304 = vadd.f32 %v1226, %v1291
    %v1305 = vadd.f32 %v1227, %v1292
    %v1306 = vadd.f32 %v1228, %v1293
    %v1307 = vadd.f32 %v1229, %v1294
    %v1308 = vadd.f32 %v1230, %v1295
    %v1309 = vadd.f32 %v1231, %v1296
    %v1310 = vadd.f32 %v1232, %v1297
    %v1311 = vadd.f32 %v1233, %v1298
    %v1312 = vadd.f32 %v1234, %v1299
    %1313 = vset.pattern.permute.xlu0 13
    %1314 = vperm.xlu0 %1313, %v26
    %v1315 = vpop.permute.xlu0 %1314
    %1317 = vset.pattern.permute.xlu0 13
    %1318 = vperm.xlu0 %1317, %v27
    %v1319 = vpop.permute.xlu0 %1318
    %1321 = vset.pattern.permute.xlu0 13
    %1322 = vperm.xlu0 %1321, %v28
    %v1323 = vpop.permute.xlu0 %1322
    %1325 = vset.pattern.permute.xlu0 13
    %1326 = vperm.xlu0 %1325, %v29
    %v1327 = vpop.permute.xlu0 %1326
    %1329 = vset.pattern.permute.xlu0 13
    %1330 = vperm.xlu0 %1329, %v30
    %v1331 = vpop.permute.xlu0 %1330
    %1333 = vset.pattern.permute.xlu0 13
    %1334 = vperm.xlu0 %1333, %v31
    %v1335 = vpop.permute.xlu0 %1334
    %1337 = vset.pattern.permute.xlu0 13
    %1338 = vperm.xlu0 %1337, %v32
    %v1339 = vpop.permute.xlu0 %1338
    %1341 = vset.pattern.permute.xlu0 13
    %1342 = vperm.xlu0 %1341, %v33
    %v1343 = vpop.permute.xlu0 %1342
    %1345 = vset.pattern.permute.xlu0 13
    %1346 = vperm.xlu0 %1345, %v34
    %v1347 = vpop.permute.xlu0 %1346
    %1349 = vset.pattern.permute.xlu0 13
    %1350 = vperm.xlu0 %1349, %v35
    %v1351 = vpop.permute.xlu0 %1350
    %1353 = vset.pattern.permute.xlu0 13
    %1354 = vperm.xlu0 %1353, %v36
    %v1355 = vpop.permute.xlu0 %1354
    %1357 = vset.pattern.permute.xlu0 13
    %1358 = vperm.xlu0 %1357, %v37
    %v1359 = vpop.permute.xlu0 %1358
    %1361 = vset.pattern.permute.xlu0 13
    %1362 = vperm.xlu0 %1361, %v38
    %v1363 = vpop.permute.xlu0 %1362
    %v1365 = vmul.f32 %v767, %v1315
    %v1366 = vmul.f32 %v768, %v1319
    %v1367 = vmul.f32 %v769, %v1323
    %v1368 = vmul.f32 %v770, %v1327
    %v1369 = vmul.f32 %v771, %v1331
    %v1370 = vmul.f32 %v772, %v1335
    %v1371 = vmul.f32 %v773, %v1339
    %v1372 = vmul.f32 %v774, %v1343
    %v1373 = vmul.f32 %v775, %v1347
    %v1374 = vmul.f32 %v776, %v1351
    %v1375 = vmul.f32 %v777, %v1355
    %v1376 = vmul.f32 %v778, %v1359
    %v1377 = vmul.f32 %v779, %v1363
    %v1378 = vadd.f32 %v1300, %v1365
    %v1379 = vadd.f32 %v1301, %v1366
    %v1380 = vadd.f32 %v1302, %v1367
    %v1381 = vadd.f32 %v1303, %v1368
    %v1382 = vadd.f32 %v1304, %v1369
    %v1383 = vadd.f32 %v1305, %v1370
    %v1384 = vadd.f32 %v1306, %v1371
    %v1385 = vadd.f32 %v1307, %v1372
    %v1386 = vadd.f32 %v1308, %v1373
    %v1387 = vadd.f32 %v1309, %v1374
    %v1388 = vadd.f32 %v1310, %v1375
    %v1389 = vadd.f32 %v1311, %v1376
    %v1390 = vadd.f32 %v1312, %v1377
    %v1391 = vadd.f32 %v858, %v859
    %v1392 = vadd.f32 %v1391, %v860
    %v1393 = vadd.f32 %v1392, %v861
    %v1394 = vadd.f32 %v1393, %v862
    %v1395 = vadd.f32 %v1394, %v863
    %v1396 = vadd.f32 %v1395, %v864
    %v1397 = vadd.f32 %v1396, %v865
    %v1398 = vadd.f32 %v1397, %v866
    %v1399 = vadd.f32 %v1398, %v867
    %v1400 = vadd.f32 %v1399, %v868
    %v1401 = vadd.f32 %v1400, %v869
    %v1402 = vadd.f32 %v1401, %v870
    %v1403 = vrot.slane %v1402, 4
    %v1404 = vadd.f32 %v1402, %v1403
    %v1405 = vrot.slane %v1404, 2
    %v1406 = vadd.f32 %v1404, %v1405
    %v1407 = vrot.slane %v1406, 1
    %v1408 = vadd.f32 %v1406, %v1407
    %s1409 = sld [smem:[#allocation2]]
    %v1410 = vstv %s1409
    %v1411 = vadd.f32 %v1408, %v1410
    %v1412 = vadd.f32 %v1001, %v1002
    %v1413 = vadd.f32 %v1412, %v1003
    %v1414 = vadd.f32 %v1413, %v1004
    %v1415 = vadd.f32 %v1414, %v1005
    %v1416 = vadd.f32 %v1415, %v1006
    %v1417 = vadd.f32 %v1416, %v1007
    %v1418 = vadd.f32 %v1417, %v1008
    %v1419 = vadd.f32 %v1418, %v1009
    %v1420 = vadd.f32 %v1419, %v1010
    %v1421 = vadd.f32 %v1420, %v1011
    %v1422 = vadd.f32 %v1421, %v1012
    %v1423 = vadd.f32 %v1422, %v1013
    %v1424 = vrot.slane %v1423, 4
    %v1425 = vadd.f32 %v1423, %v1424
    %v1426 = vrot.slane %v1425, 2
    %v1427 = vadd.f32 %v1425, %v1426
    %v1428 = vrot.slane %v1427, 1
    %v1429 = vadd.f32 %v1427, %v1428
    %v1430 = vadd.f32 %v1378, %v1379
    %v1431 = vadd.f32 %v1430, %v1380
    %v1432 = vadd.f32 %v1431, %v1381
    %v1433 = vadd.f32 %v1432, %v1382
    %v1434 = vadd.f32 %v1433, %v1383
    %v1435 = vadd.f32 %v1434, %v1384
    %v1436 = vadd.f32 %v1435, %v1385
    %v1437 = vadd.f32 %v1436, %v1386
    %v1438 = vadd.f32 %v1437, %v1387
    %v1439 = vadd.f32 %v1438, %v1388
    %v1440 = vadd.f32 %v1439, %v1389
    %v1441 = vadd.f32 %v1440, %v1390
    %v1442 = vrot.slane %v1441, 4
    %v1443 = vadd.f32 %v1441, %v1442
    %v1444 = vrot.slane %v1443, 2
    %v1445 = vadd.f32 %v1443, %v1444
    %v1446 = vrot.slane %v1445, 1
    %v1447 = vadd.f32 %v1445, %v1446
    %v1448 = vmul.f32 %v17, %v17
    %v1449 = vmul.f32 %v1448, 0.5
    %v1450 = vadd.f32 %v1449, %v1447
    %v1451 = vmul.f32 %v17, 0.5
    %v1452 = vmul.f32 %v1451, %v1429
    %v1453 = vadd.f32 %v1450, %v1452
    %v1454 = vmul.f32 %v1429, %v1429
    %v1455 = vmul.f32 %v1454, 0.06944445
    %v1456 = vsub.f32 %v1453, %v1455
    %1457 = vst [vmem:[#allocation3] sm:$0x1] %v1411
    %1458 = vst [vmem:[#allocation3 + $0x1] sm:$0x1] %v1456
    // Predicated region
    $region14: #{tpu_custom_call.1} parent=1 // pred_check
      _
    $region15: #{tpu_custom_call.1} parent=1 // pred_check_branch
      %1460 = sbr.rel (0) target = $region17
    $region16: #{tpu_custom_call.1} parent=1 // pred_region
      %s1462 = ssub.s32 32, 32
      %1463 = vsyncadd [#allocation4], %s1462
      %s1465 = sshll.u32 [#allocation3], 4
      %s1466 = int_to_ptr.vmem [resolvable:$true] %s1465
      %1468 = dma.vmem_to_hbm [thread:$0]  %s1466, 32, %s3, [#allocation4]
    $region17: #{tpu_custom_call.1} parent=1 // pred_fallthru
      _
    // Predicated region
    $region18: #{tpu_custom_call.1} parent=1 // pred_check
      _
    $region19: #{tpu_custom_call.1} parent=1 // pred_check_branch
      %1470 = sbr.rel (0) target = $region21
    $region20: #{tpu_custom_call.1} parent=1 // pred_region
      %1471 = dma.done [#allocation4], 32
    $region21: #{tpu_custom_call.1} parent=1 // pred_fallthru
      _
    %1472 = vsyncpa [#allocation4], 1

</llo_original>
